<compile_context>
chip_gen: v5e
topology: v5e:2x2
jax: 0.10.0
libtpu: 0.0.40
codegen_flags: <defaults>
</compile_context>

<pallas_src>
import functools
import math

import jax
import jax.numpy as jnp
from jax import lax
from jax.experimental import pallas as pl
from jax.experimental.pallas import tpu as pltpu


def _simple_topk(logits, top_k):
    """Iterative top-k over the expert (sublane) axis (~6 (E,TN) passes per k)."""
    n_exp = logits.shape[0]
    expert_ids = lax.broadcasted_iota(jnp.int32, logits.shape, 0)
    neg_big = jnp.float32(-1e30)  # mask value valid for raw logits
    remaining = logits
    vals, idxs = [], []
    for _ in range(top_k):
        mx = jnp.max(remaining, axis=0, keepdims=True)                     # (1, TN)
        # first-occurrence (lowest-index) tie break, same as lax.top_k
        sel = jnp.min(jnp.where(remaining == mx, expert_ids, n_exp),
                      axis=0, keepdims=True).astype(jnp.int32)
        vals.append(mx)
        idxs.append(sel)
        remaining = jnp.where(expert_ids == sel, neg_big, remaining)
    return jnp.concatenate(vals, axis=0), jnp.concatenate(idxs, axis=0)


def _packed_topk(logits, top_k):
    """Packed-key top-k: value + inverted expert index packed into one sortable
    int32 key, so each k step is one max-reduce + one masked select
    (~3 full (E,TN) passes/k instead of ~6).  The low ceil(log2(E)) bits of the
    sortable value are replaced by the inverted index -> lowest index wins ties;
    recovered values carry <= 2^(bits-23) relative error (harmless for gating).
    """
    n_exp = logits.shape[0]
    bits = max(1, (n_exp - 1).bit_length())
    low_mask = (1 << bits) - 1
    sign_flip = jnp.int32(0x7FFFFFFF)
    hi_mask = jnp.int32(~low_mask)
    int_min = jnp.int32(-(2 ** 31))

    raw = pltpu.bitcast(logits, jnp.int32)
    # order-preserving int key for IEEE f32 (negatives reversed via XOR)
    skey = jnp.where(raw >= 0, raw, raw ^ sign_flip)
    ids = lax.broadcasted_iota(jnp.int32, logits.shape, 0)
    keys = (skey & hi_mask) | (jnp.int32(low_mask) - ids)   # unique per lane

    vals, idxs = [], []
    for _ in range(top_k):
        winner = jnp.max(keys, axis=0, keepdims=True)                    # (1, TN)
        sel = jnp.int32(low_mask) - (winner & jnp.int32(low_mask))       # expert id
        vkey = winner & hi_mask                                          # value part
        vbits = jnp.where(vkey >= 0, vkey, vkey ^ sign_flip)
        vals.append(pltpu.bitcast(vbits, jnp.float32))
        idxs.append(sel)
        keys = jnp.where(keys == winner, int_min, keys)
    return jnp.concatenate(vals, axis=0), jnp.concatenate(idxs, axis=0)


def _moe_gate_kernel(x_ref, w_ref, idx_ref, wgt_ref, *,
                     top_k, norm_topk_prob, compute_dtype):
    # x_ref : (TN, H)   w_ref : (E, H)   idx_ref/wgt_ref : (top_k, TN)
    x = x_ref[...]
    if x.dtype != compute_dtype:
        # In-kernel downcast (VPU, hidden under the next tile's DMA): avoids the
        # extra HBM read+write a wrapper-side astype of X would cost, and keeps
        # the MXU matmul a single bf16 pass instead of multiple f32 passes.
        x = x.astype(compute_dtype)
    w = w_ref[...]
    if w.dtype != compute_dtype:
        w = w.astype(compute_dtype)

    # NT contraction on the MXU: (E, H) . (TN, H)^T -> (E, TN), f32 accumulate.
    logits = lax.dot_general(
        w, x,
        dimension_numbers=(((1,), (1,)), ((), ())),
        preferred_element_type=jnp.float32,
    )  # experts on sublanes, tokens on lanes

    # Top-k over the expert (sublane) axis -> lane-dense (1, TN) rows per k.
    if top_k >= 3:
        topk_l, topk_i = _packed_topk(logits, top_k)   # fewer VALU passes (v5e win)
    else:
        topk_l, topk_i = _simple_topk(logits, top_k)

    if top_k > 1 and norm_topk_prob:
        # Softmax over only the k selected logits == renormalized full softmax
        # (the global partition function cancels).  topk_l[0] is the per-token
        # max, so exp never overflows.
        e = jnp.exp(topk_l - topk_l[0:1, :])
        topk_w = e * pl.reciprocal(jnp.sum(e, axis=0, keepdims=True), approx=True)
    else:
        # Need true softmax probabilities of the selected experts.
        m = jnp.max(logits, axis=0, keepdims=True)
        z = jnp.sum(jnp.exp(logits - m), axis=0, keepdims=True)
        topk_w = jnp.exp(topk_l - m) * pl.reciprocal(z, approx=True)

    idx_ref[...] = topk_i
    wgt_ref[...] = topk_w.astype(wgt_ref.dtype)


def _round_up(a, b):
    return (a + b - 1) // b * b


def _chip_defaults():
    """Per-generation VMEM budget / tile cap (conservative if detection fails)."""
    try:
        kind = jax.devices()[0].device_kind.lower()
    except Exception:
        kind = ""
    if "v2" in kind or "v3" in kind:               # 16 MiB VMEM
        return dict(tn_cap=512, vmem_budget=10 << 20, vmem_limit=14 << 20,
                    two_tc=False)
    if "7" in kind:                                # v7x: 64 MiB VMEM per TC, 2 TCs
        return dict(tn_cap=1024, vmem_budget=44 << 20, vmem_limit=56 << 20,
                    two_tc=True)
    # v5e / v6e / v5p / v4 / unknown: 128 MiB physical VMEM
    return dict(tn_cap=2048, vmem_budget=80 << 20, vmem_limit=96 << 20,
                two_tc=False)


def _pick_token_tile(n, h, n_exp, top_k, x_bytes, w_bytes, depth, budget, cap):
    """Largest TN (multiple of 128) whose working set fits the VMEM budget."""
    best = 128
    tn = 128
    while tn <= cap:
        need = (depth * tn * h * x_bytes        # streamed X tiles (pipeline depth)
                + 2 * n_exp * h * w_bytes       # gate weight (assume double-buffered)
                + 2 * 2 * top_k * tn * 4        # idx + weight outputs, double-buffered
                + 4 * n_exp * tn * 4)           # (E, TN) logits + top-k temporaries
        if need <= budget:
            best = tn
        tn += 128
    return best


def moe_gate(hidden_states, weight, *, top_k, norm_topk_prob=True,
             block_n=None, vmem_limit_bytes=None, pipeline_depth=2,
             compute_dtype=None):
    """Pallas MoE gate forward.

    Returns (topk_idx int32 (N, k), topk_weight f32 (N, k), aux_loss=None).
    block_n / vmem_limit_bytes default per chip generation; pipeline_depth lets
    you sweep pl.Buffered(3) on the streamed X input where VMEM headroom allows.
    """
    bsz, seq_len, h = hidden_states.shape
    x = hidden_states.reshape(-1, h)            # (N, H)
    n = x.shape[0]
    n_exp = weight.shape[0]

    # Keep MXU operands narrow: if X arrives f32 it is streamed as-is and cast
    # to bf16 inside the kernel; the small gate weight is cast once here.
    if compute_dtype is None:
        compute_dtype = jnp.bfloat16 if x.dtype == jnp.float32 else x.dtype
    if weight.dtype != compute_dtype:
        weight = weight.astype(compute_dtype)

    chip = _chip_defaults()
    if vmem_limit_bytes is None:
        vmem_limit_bytes = chip["vmem_limit"]
    if block_n is None:
        tn = _pick_token_tile(n, h, n_exp, top_k,
                              x.dtype.itemsize, weight.dtype.itemsize,
                              pipeline_depth, chip["vmem_budget"], chip["tn_cap"])
    else:
        tn = max(128, (block_n // 128) * 128)
    tn = min(tn, _round_up(n, 128))

    # Even tile count so a 2-TensorCore chip (v7x) gets a balanced split.
    if chip["two_tc"] and n > tn:
        n_pad = _round_up(n, 2 * tn)
    else:
        n_pad = _round_up(n, tn)
    if n_pad != n:
        x = jnp.pad(x, ((0, n_pad - n), (0, 0)))   # zero rows -> harmless, sliced off

    if pipeline_depth == 2:
        x_spec = pl.BlockSpec((tn, h), lambda i: (i, 0))
    else:
        x_spec = pl.BlockSpec((tn, h), lambda i: (i, 0),
                              pipeline_mode=pl.Buffered(pipeline_depth))
    # Gate weight: constant index_map keeps it VMEM-resident across the grid.
    # TODO(synk): if the Mosaic VMEM report shows this block double-buffered,
    # an untiled VMEM-resident spec would free one E*H copy (only matters on
    # v7x at large TN); the tile-size budget above already assumes 2x.
    w_spec = pl.BlockSpec((n_exp, h), lambda i: (0, 0))

    kernel = functools.partial(
        _moe_gate_kernel, top_k=top_k, norm_topk_prob=norm_topk_prob,
        compute_dtype=compute_dtype,
    )

    bytes_accessed = (n_pad * h * x.dtype.itemsize
                      + n_exp * h * weight.dtype.itemsize
                      + 2 * n_pad * top_k * 4)
    transcendentals = n_pad * (top_k if (top_k > 1 and norm_topk_prob) else n_exp)

    idx_t, wgt_t = pl.pallas_call(
        kernel,
        out_shape=(
            jax.ShapeDtypeStruct((top_k, n_pad), jnp.int32),
            jax.ShapeDtypeStruct((top_k, n_pad), jnp.float32),
        ),
        grid=(n_pad // tn,),
        in_specs=[x_spec, w_spec],
        out_specs=(
            pl.BlockSpec((top_k, tn), lambda i: (0, i)),  # lane-dense output slabs
            pl.BlockSpec((top_k, tn), lambda i: (0, i)),
        ),
        compiler_params=pltpu.CompilerParams(
            dimension_semantics=("parallel",),
            vmem_limit_bytes=vmem_limit_bytes,
        ),
        cost_estimate=pl.CostEstimate(
            flops=2 * n_pad * h * n_exp,
            transcendentals=transcendentals,
            bytes_accessed=bytes_accessed,
        ),
    )(x, weight)

    # Cheap wrapper-side layout plumbing: back to (N, top_k), drop padded rows.
    topk_idx = idx_t.T[:n]
    topk_weight = wgt_t.T[:n]
    return topk_idx, topk_weight, None


def _reference(hidden_states, weight, top_k, norm_topk_prob, compute_dtype):
    """Pure-JAX reference mirroring the PyTorch forward (eval mode), evaluated
    at the kernel's compute dtype so index comparisons are meaningful."""
    b, s, h = hidden_states.shape
    x = hidden_states.reshape(-1, h).astype(compute_dtype).astype(jnp.float32)
    w = weight.astype(compute_dtype).astype(jnp.float32)
    logits = x @ w.T
    scores = jax.nn.softmax(logits, axis=-1)
    topk_w, topk_i = jax.lax.top_k(scores, top_k)
    if top_k > 1 and norm_topk_prob:
        topk_w = topk_w / (jnp.sum(topk_w, axis=-1, keepdims=True) + 1e-20)
    return topk_i.astype(jnp.int32), topk_w


def _check(hidden_states, weight, top_k, norm_topk_prob):
    topk_idx, topk_weight, aux_loss = moe_gate(
        hidden_states, weight, top_k=top_k, norm_topk_prob=norm_topk_prob)
    jax.block_until_ready((topk_idx, topk_weight))

    compute_dtype = (jnp.bfloat16 if hidden_states.dtype == jnp.float32
                     else hidden_states.dtype)
    ref_idx, ref_w = _reference(hidden_states, weight, top_k, norm_topk_prob,
                                compute_dtype)

    n = hidden_states.shape[0] * hidden_states.shape[1]
    assert topk_idx.shape == (n, top_k)
    assert topk_weight.shape == (n, top_k)
    assert aux_loss is None
    assert bool(jnp.all(topk_idx == ref_idx))
    # tolerance covers pl.reciprocal(approx=True) + packed-key value truncation
    assert bool(jnp.allclose(topk_weight, ref_w, atol=2e-3, rtol=2e-3))


if __name__ == "__main__":
    # Synthetic config (mirrors MoEGate.__init__ shapes):
    bsz, seq_len, hidden_size = 2, 8, 32
    n_routed_experts = 8

    key = jax.random.PRNGKey(0)
    k_x, k_w = jax.random.split(key)

    hidden_states = jax.random.normal(k_x, (bsz, seq_len, hidden_size), jnp.float32)

    # kaiming_uniform_(a=sqrt(5)) -> U(-1/sqrt(fan_in), 1/sqrt(fan_in)), fan_in = hidden
    bound = 1.0 / math.sqrt(hidden_size)
    weight = jax.random.uniform(
        k_w, (n_routed_experts, hidden_size), jnp.float32, minval=-bound, maxval=bound
    )

    # top_k=2 exercises the simple selection loop + renormalization shortcut;
    # top_k=4 exercises the packed-key selection + full-softmax weighting path.
    _check(hidden_states, weight, top_k=2, norm_topk_prob=True)
    _check(hidden_states, weight, top_k=4, norm_topk_prob=False)

    print("KERNEL_OK")
</pallas_src>

<mosaic_0001>
module attributes {stable_mosaic.version = 11 : i64} {
  func.func @_moe_gate_kernel(%arg0: i32, %arg1: memref<128x32xf32, #tpu.memory_space<vmem>>, %arg2: memref<8x32xbf16, #tpu.memory_space<vmem>>, %arg3: memref<2x128xi32, #tpu.memory_space<vmem>>, %arg4: memref<2x128xf32, #tpu.memory_space<vmem>>) attributes {dimension_semantics = [#tpu.dimension_semantics<parallel>], iteration_bounds = array<i64: 1>, scalar_prefetch = 0 : i64, scratch_operands = 0 : i64, tpu.core_type = #tpu.core_type<tc>, window_params = [{transform_indices = @transform_0, window_bounds = array<i64: 128, 32>}, {pipeline_mode = #tpu.pipeline_mode<synchronous>, transform_indices = @transform_1, window_bounds = array<i64: 8, 32>}, {transform_indices = @transform_2, window_bounds = array<i64: 2, 128>}, {transform_indices = @transform_3, window_bounds = array<i64: 2, 128>}]} {
    %c0 = arith.constant 0 : index
    %c0_0 = arith.constant 0 : index
    %0 = vector.load %arg1[%c0, %c0_0] : memref<128x32xf32, #tpu.memory_space<vmem>>, vector<128x32xf32>
    %1 = arith.truncf %0 : vector<128x32xf32> to vector<128x32xbf16>
    %c0_1 = arith.constant 0 : index
    %c0_2 = arith.constant 0 : index
    %2 = vector.load %arg2[%c0_1, %c0_2] : memref<8x32xbf16, #tpu.memory_space<vmem>>, vector<8x32xbf16>
    %cst = arith.constant dense<0.000000e+00> : vector<8x128xf32>
    %3 = tpu.matmul %2, %1, %cst {dimension_numbers = #tpu.dot_dimension_numbers<[1], [1], [0], [0], [0, 0, 1, 0], [], []>} : vector<8x32xbf16>, vector<128x32xbf16>, vector<8x128xf32> -> vector<8x128xf32>
    %4 = tpu.iota {dimensions = array<i32: 0>} : vector<8x128xi32>
    %cst_3 = arith.constant dense<0xFF800000> : vector<128xf32>
    %5 = vector.multi_reduction <maximumf>, %3, %cst_3 [0] : vector<8x128xf32> to vector<128xf32>
    %6 = vector.shape_cast %5 : vector<128xf32> to vector<1x128xf32>
    %7 = vector.broadcast %6 : vector<1x128xf32> to vector<8x128xf32>
    %8 = arith.cmpf oeq, %3, %7 : vector<8x128xf32>
    %c8_i32 = arith.constant 8 : i32
    %9 = vector.broadcast %c8_i32 : i32 to vector<8x128xi32>
    %10 = arith.select %8, %4, %9 : vector<8x128xi1>, vector<8x128xi32>
    %cst_4 = arith.constant dense<2147483647> : vector<128xi32>
    %11 = vector.multi_reduction <minsi>, %10, %cst_4 [0] : vector<8x128xi32> to vector<128xi32>
    %12 = vector.shape_cast %11 : vector<128xi32> to vector<1x128xi32>
    %13 = vector.broadcast %12 : vector<1x128xi32> to vector<8x128xi32>
    %14 = arith.cmpi eq, %4, %13 : vector<8x128xi32>
    %cst_5 = arith.constant -1.000000e+30 : f32
    %15 = vector.broadcast %cst_5 : f32 to vector<8x128xf32>
    %16 = arith.select %14, %15, %3 : vector<8x128xi1>, vector<8x128xf32>
    %cst_6 = arith.constant dense<0xFF800000> : vector<128xf32>
    %17 = vector.multi_reduction <maximumf>, %16, %cst_6 [0] : vector<8x128xf32> to vector<128xf32>
    %18 = vector.shape_cast %17 : vector<128xf32> to vector<1x128xf32>
    %19 = vector.broadcast %18 : vector<1x128xf32> to vector<8x128xf32>
    %20 = arith.cmpf oeq, %16, %19 : vector<8x128xf32>
    %c8_i32_7 = arith.constant 8 : i32
    %21 = vector.broadcast %c8_i32_7 : i32 to vector<8x128xi32>
    %22 = arith.select %20, %4, %21 : vector<8x128xi1>, vector<8x128xi32>
    %cst_8 = arith.constant dense<2147483647> : vector<128xi32>
    %23 = vector.multi_reduction <minsi>, %22, %cst_8 [0] : vector<8x128xi32> to vector<128xi32>
    %24 = vector.shape_cast %23 : vector<128xi32> to vector<1x128xi32>
    %25 = tpu.concatenate %6, %18 in 0 : vector<1x128xf32>, vector<1x128xf32> -> vector<2x128xf32>
    %26 = tpu.concatenate %12, %24 in 0 : vector<1x128xi32>, vector<1x128xi32> -> vector<2x128xi32>
    %27 = vector.extract_strided_slice %25 {offsets = [0, 0], sizes = [1, 128], strides = [1, 1]} : vector<2x128xf32> to vector<1x128xf32>
    %28 = vector.broadcast %27 : vector<1x128xf32> to vector<2x128xf32>
    %29 = arith.subf %25, %28 : vector<2x128xf32>
    %30 = math.exp %29 : vector<2x128xf32>
    %cst_9 = arith.constant dense<0.000000e+00> : vector<128xf32>
    %31 = vector.multi_reduction <add>, %30, %cst_9 [0] : vector<2x128xf32> to vector<128xf32>
    %32 = vector.shape_cast %31 : vector<128xf32> to vector<1x128xf32>
    %33 = tpu.reciprocal %32 {approx = true} : vector<1x128xf32> -> vector<1x128xf32>
    %34 = vector.broadcast %33 : vector<1x128xf32> to vector<2x128xf32>
    %35 = arith.mulf %30, %34 : vector<2x128xf32>
    %c0_10 = arith.constant 0 : index
    %c0_11 = arith.constant 0 : index
    %36 = vector.load %arg3[%c0_10, %c0_11] : memref<2x128xi32, #tpu.memory_space<vmem>>, vector<2x128xi32>
    tpu.vector_store %arg3[%c0_10, %c0_11], %26 {strides = array<i32>} : memref<2x128xi32, #tpu.memory_space<vmem>>, vector<2x128xi32>,
    %c0_12 = arith.constant 0 : index
    %c0_13 = arith.constant 0 : index
    %37 = vector.load %arg4[%c0_12, %c0_13] : memref<2x128xf32, #tpu.memory_space<vmem>>, vector<2x128xf32>
    tpu.vector_store %arg4[%c0_12, %c0_13], %35 {strides = array<i32>} : memref<2x128xf32, #tpu.memory_space<vmem>>, vector<2x128xf32>,
    return
  }
  func.func @transform_0(%arg0: i32) -> (i32, i32) {
    %c0_i32 = arith.constant 0 : i32
    %c0_i32_0 = arith.constant 0 : i32
    return %arg0, %c0_i32 : i32, i32
  }
  func.func @transform_1(%arg0: i32) -> (i32, i32) {
    %c0_i32 = arith.constant 0 : i32
    %c0_i32_0 = arith.constant 0 : i32
    %c0_i32_1 = arith.constant 0 : i32
    return %c0_i32, %c0_i32_0 : i32, i32
  }
  func.func @transform_2(%arg0: i32) -> (i32, i32) {
    %c0_i32 = arith.constant 0 : i32
    %c0_i32_0 = arith.constant 0 : i32
    return %c0_i32, %arg0 : i32, i32
  }
  func.func @transform_3(%arg0: i32) -> (i32, i32) {
    %c0_i32 = arith.constant 0 : i32
    %c0_i32_0 = arith.constant 0 : i32
    return %c0_i32, %arg0 : i32, i32
  }
}

</mosaic_0001>

<llo_original>
// kernel: tpu_custom_call.1
$region0: #{tpu_custom_call.1}
  #allocation0 [shape = 'u32[]', space=smem, size = 0x4, offset = 0x4, fixed_abs, tag = 'smem constant byte address 0x4 - core index']
  #allocation1 [shape = 'u32[72,128]{1,0:T(1,128)}', space=vmem, size = 0x9000, scoped, tag = 'internal scratch']
  %s0 = inlined_call_operand.vmem [shape: f32[128,32], index: 0, kind: input, shape index: {}]
  %s1 = inlined_call_operand.vmem [shape: bf16[8,32], index: 1, kind: input, shape index: {}]
  %s2 = inlined_call_operand.hbm [shape: s32[2,128], index: 2, kind: output, shape index: {0}]
  %s3 = inlined_call_operand.hbm [shape: f32[2,128], index: 3, kind: output, shape index: {1}]
  %4 = xla_tuple %s2, %s3
  %s5 = sld [smem:[#allocation0]]
  $region26: #{tpu_custom_call.1} parent=0
    _
  %s7 = ssub.s32 1, %s5
  %s8 = scalar_select 0, %s7, %s5
  $region1: #{tpu_custom_call.1} parent=0
    #allocation2 [shape = 'u8[1024]{0}', space=vmem, size = 0x400, scoped, tag = 'output window, operand 0, single buffered']
    #allocation3 [shape = 's32[1]{0}', space=sflag, size = 0x4, scoped, tag = 'scoped memory for tpu_custom_call.1']
    #allocation4 [shape = 'u8[1024]{0}', space=vmem, size = 0x400, scoped, tag = 'output window, operand 1, single buffered']
    #allocation5 [shape = 's32[1]{0}', space=sflag, size = 0x4, scoped, tag = 'scoped memory for tpu_custom_call.1']
    %9 = vsyncpa [#allocation3], 0
    %10 = vsyncpa [#allocation5], 0
    // Predicated region
    $region2: #{tpu_custom_call.1} parent=1 // pred_check
      _
    $region3: #{tpu_custom_call.1} parent=1 // pred_check_branch
      %12 = sbr.rel (0) target = $region5
    $region4: #{tpu_custom_call.1} parent=1 // pred_region
      _
    $region5: #{tpu_custom_call.1} parent=1 // pred_fallthru
      _
    // Predicated region
    $region6: #{tpu_custom_call.1} parent=1 // pred_check
      _
    $region7: #{tpu_custom_call.1} parent=1 // pred_check_branch
      %14 = sbr.rel (0) target = $region9
    $region8: #{tpu_custom_call.1} parent=1 // pred_region
      _
    $region9: #{tpu_custom_call.1} parent=1 // pred_fallthru
      _
    %v15 = vld [vmem:[%s0] sm:$0xff]
    %v16 = vld [vmem:[%s0 + $0x8] sm:$0xff]
    %v17 = vld [vmem:[%s0 + $0x10] sm:$0xff]
    %v18 = vld [vmem:[%s0 + $0x18] sm:$0xff]
    %v19 = vld [vmem:[%s0 + $0x20] sm:$0xff]
    %v20 = vld [vmem:[%s0 + $0x28] sm:$0xff]
    %v21 = vld [vmem:[%s0 + $0x30] sm:$0xff]
    %v22 = vld [vmem:[%s0 + $0x38] sm:$0xff]
    %v23 = vld [vmem:[%s0 + $0x40] sm:$0xff]
    %v24 = vld [vmem:[%s0 + $0x48] sm:$0xff]
    %v25 = vld [vmem:[%s0 + $0x50] sm:$0xff]
    %v26 = vld [vmem:[%s0 + $0x58] sm:$0xff]
    %v27 = vld [vmem:[%s0 + $0x60] sm:$0xff]
    %v28 = vld [vmem:[%s0 + $0x68] sm:$0xff]
    %v29 = vld [vmem:[%s0 + $0x70] sm:$0xff]
    %v30 = vld [vmem:[%s0 + $0x78] sm:$0xff]
    %v31 = vpack.c.bf16 %v16, %v15
    %v32 = vpack.c.bf16 %v18, %v17
    %v33 = vpack.c.bf16 %v20, %v19
    %v34 = vpack.c.bf16 %v22, %v21
    %v35 = vpack.c.bf16 %v24, %v23
    %v36 = vpack.c.bf16 %v26, %v25
    %v37 = vpack.c.bf16 %v28, %v27
    %v38 = vpack.c.bf16 %v30, %v29
    %v39 = vld [vmem:[%s1] sm:$0xf]
    %vm40 = vcmask 261120
    %v42 = vsel %vm40, %v39, 0
    %v45 = vsel %vm40, %v31, 0
    %v48 = vsel %vm40, %v32, 0
    %v51 = vsel %vm40, %v33, 0
    %v54 = vsel %vm40, %v34, 0
    %v57 = vsel %vm40, %v35, 0
    %v60 = vsel %vm40, %v36, 0
    %v63 = vsel %vm40, %v37, 0
    %v66 = vsel %vm40, %v38, 0
    %68 = vmatpush.bf16.xpose.msra.mxu0 %v66
    %69 = vmatpush.bf16.xpose.msra.mxu0 %v63
    %70 = vmatpush.bf16.xpose.msra.mxu0 %v60
    %71 = vmatpush.bf16.xpose.msra.mxu0 %v57
    %72 = vmatpush.bf16.xpose.msra.mxu0 %v54
    %73 = vmatpush.bf16.xpose.msra.mxu0 %v51
    %74 = vmatpush.bf16.xpose.msra.mxu0 %v48
    %75 = vmatpush.bf16.xpose.msra.mxu0 %v45
    %76 = vmatmul.bf16.gmra.mxu0 %v42
    %v77 = vpop.f32.mrf.mxu0
    %v78 = vadd.f32 0.0, %v77
    %v79 = vpop.f32.mrf.mxu0
    %80 = vdwg.mxu0
    %v81 = vlaneseq
    %v82 = vshrl.u32 %v81, 7
    %v83 = vrot.slane %v78, 4
    %v84 = vmax.f32 %v78, %v83
    %v85 = vrot.slane %v84, 2
    %v86 = vmax.f32 %v84, %v85
    %v87 = vrot.slane %v86, 1
    %v88 = vmax.f32 %v86, %v87
    %vm89 = vcmp.eq.f32.partialorder %v78, %v88
    %v90 = vsel %vm89, %v82, 8
    %v91 = vrot.slane %v90, 4
    %vm92 = vcmp.lt.s32.totalorder %v90, %v91
    %v93 = vsel %vm92, %v90, %v91
    %v94 = vrot.slane %v93, 2
    %vm95 = vcmp.lt.s32.totalorder %v93, %v94
    %v96 = vsel %vm95, %v93, %v94
    %v97 = vrot.slane %v96, 1
    %vm98 = vcmp.lt.s32.totalorder %v96, %v97
    %v99 = vsel %vm98, %v96, %v97
    %vm100 = vcmp.eq.s32.totalorder %v82, %v99
    %v101 = vsel %vm100, -1e+30, %v78
    %v102 = vrot.slane %v101, 4
    %v103 = vmax.f32 %v101, %v102
    %v104 = vrot.slane %v103, 2
    %v105 = vmax.f32 %v103, %v104
    %v106 = vrot.slane %v105, 1
    %v107 = vmax.f32 %v105, %v106
    %vm108 = vcmp.eq.f32.partialorder %v101, %v107
    %v109 = vsel %vm108, %v82, 8
    %v110 = vrot.slane %v109, 4
    %vm111 = vcmp.lt.s32.totalorder %v109, %v110
    %v112 = vsel %vm111, %v109, %v110
    %v113 = vrot.slane %v112, 2
    %vm114 = vcmp.lt.s32.totalorder %v112, %v113
    %v115 = vsel %vm114, %v112, %v113
    %v116 = vrot.slane %v115, 1
    %vm117 = vcmp.lt.s32.totalorder %v115, %v116
    %v118 = vsel %vm117, %v115, %v116
    %vm119 = vcmask 1040384
    %v120 = vsel %vm119, %v88, %v107
    %v121 = vsel %vm119, %v99, %v118
    %v122 = vperm.slane %v120, 0
    %v123 = vsub.f32 %v120, %v122
    %v124 = vmul.f32 %v123, 1.442695
    %v125 = vpow.pop %v124
    %vm126 = vcmask 1041408
    %v127 = vsel %vm126, %v125, 0.0
    %v128 = vrot.slane %v127, 4
    %v129 = vadd.f32 %v127, %v128
    %v130 = vrot.slane %v129, 2
    %v131 = vadd.f32 %v129, %v130
    %v132 = vrot.slane %v131, 1
    %v133 = vadd.f32 %v131, %v132
    %v134 = vrcp.pop %v133
    %v135 = vmul.f32 %v125, %v134
    %136 = vst [vmem:[#allocation2] sm:$0x3] %v121
    %137 = vst [vmem:[#allocation4] sm:$0x3] %v135
    // Predicated region
    $region10: #{tpu_custom_call.1} parent=1 // pred_check
      _
    $region11: #{tpu_custom_call.1} parent=1 // pred_check_branch
      %139 = sbr.rel (0) target = $region13
    $region12: #{tpu_custom_call.1} parent=1 // pred_region
      %141 = vsyncadd [#allocation3], 0
      %s143 = sshll.u32 [#allocation2], 4
      %s144 = int_to_ptr.vmem [resolvable:$true] %s143
      %s145 = sshll.u32 %s2, 4
      %s146 = int_to_ptr.hbm [resolvable:$true] %s145
      %148 = dma.vmem_to_hbm [thread:$0]  %s144, 32, %s146, [#allocation3]
    $region13: #{tpu_custom_call.1} parent=1 // pred_fallthru
      _
    // Predicated region
    $region14: #{tpu_custom_call.1} parent=1 // pred_check
      _
    $region15: #{tpu_custom_call.1} parent=1 // pred_check_branch
      %150 = sbr.rel (0) target = $region17
    $region16: #{tpu_custom_call.1} parent=1 // pred_region
      %152 = vsyncadd [#allocation5], 0
      %s154 = sshll.u32 [#allocation4], 4
      %s155 = int_to_ptr.vmem [resolvable:$true] %s154
      %s156 = sshll.u32 %s3, 4
      %s157 = int_to_ptr.hbm [resolvable:$true] %s156
      %159 = dma.vmem_to_hbm [thread:$0]  %s155, 32, %s157, [#allocation5]
    $region17: #{tpu_custom_call.1} parent=1 // pred_fallthru
      _
    // Predicated region
    $region18: #{tpu_custom_call.1} parent=1 // pred_check
      _
    $region19: #{tpu_custom_call.1} parent=1 // pred_check_branch
      %161 = sbr.rel (0) target = $region21
    $region20: #{tpu_custom_call.1} parent=1 // pred_region
      %163 = dma.done [#allocation3], 32
    $region21: #{tpu_custom_call.1} parent=1 // pred_fallthru
      _
    // Predicated region
    $region22: #{tpu_custom_call.1} parent=1 // pred_check
      _
    $region23: #{tpu_custom_call.1} parent=1 // pred_check_branch
      %165 = sbr.rel (0) target = $region25
    $region24: #{tpu_custom_call.1} parent=1 // pred_region
      %167 = dma.done [#allocation5], 32
    $region25: #{tpu_custom_call.1} parent=1 // pred_fallthru
      _
    %168 = vsyncpa [#allocation3], 1
    %169 = vsyncpa [#allocation5], 1

</llo_original>
